<compile_context>
chip_gen: v5e
topology: v5e:2x2
jax: 0.10.0
libtpu: 0.0.40
codegen_flags: <defaults>
</compile_context>

<pallas_src>
import functools

import jax
import jax.numpy as jnp
from jax.experimental import pallas as pl
from jax.experimental.pallas import tpu as pltpu


# > v5e's 16 MiB default scoped VMEM, < v7x's 64 MiB physical VMEM.
_VMEM_LIMIT_BYTES = 56 * 1024 * 1024


# ---------------------------------------------------------------------------
# Host-side helpers (padding / weight repacking)
# ---------------------------------------------------------------------------

def _round_up(x, m):
    return (x + m - 1) // m * m


def _pad_gates(w, H, H_pad, axis):
    """Zero-pad the 4H (i,f,g,o) axis so each gate grows from H to H_pad."""
    shape = w.shape
    w4 = w.reshape(shape[:axis] + (4, H) + shape[axis + 1:])
    pad = [(0, 0)] * w4.ndim
    pad[axis + 1] = (0, H_pad - H)
    w4 = jnp.pad(w4, pad)
    return w4.reshape(shape[:axis] + (4 * H_pad,) + shape[axis + 1:])


def _prepare_params(params, H_pad, O_pad):
    """One-time repack: transpose to right-multiply (x @ W) layout, pre-sum the
    LSTM biases, fuse W_ih/W_hh for layers > 0, zero-pad hidden/output dims."""
    H = params["w_pre"].shape[0]
    O = params["w_fc"].shape[0]
    L = params["w_ih"].shape[0]
    dH = H_pad - H
    dO = O_pad - O

    w_pre = jnp.pad(params["w_pre"].T, ((0, 0), (0, dH)))               # (D, H_pad)
    b_pre = jnp.pad(params["b_pre"], ((0, 0), (0, dH)))                 # (1, H_pad)

    w_ih = _pad_gates(params["w_ih"], H, H_pad, axis=1)                 # (L, 4H_pad, H)
    w_ih = jnp.transpose(jnp.pad(w_ih, ((0, 0), (0, 0), (0, dH))),
                         (0, 2, 1))                                     # (L, H_pad, 4H_pad)
    w_hh = _pad_gates(params["w_hh"], H, H_pad, axis=1)
    w_hh = jnp.transpose(jnp.pad(w_hh, ((0, 0), (0, 0), (0, dH))),
                         (0, 2, 1))                                     # (L, H_pad, 4H_pad)

    b_sum = _pad_gates(params["b_ih"] + params["b_hh"], H, H_pad, axis=1)  # (L, 4H_pad)

    w_hh0 = w_hh[0:1]                                                   # (1, H_pad, 4H_pad)
    if L > 1:
        # Fused [x; h] weight for layers > 0: single MXU matmul per layer-step.
        w_cat = jnp.concatenate([w_ih[1:], w_hh[1:]], axis=1)           # (L-1, 2H_pad, 4H_pad)
        b_rest = b_sum[1:].reshape(L - 1, 1, 4 * H_pad)
    else:
        # Dummy (never read) so shapes stay non-empty when L == 1.
        w_cat = jnp.zeros((1, 2 * H_pad, 4 * H_pad), jnp.float32)
        b_rest = jnp.zeros((1, 1, 4 * H_pad), jnp.float32)

    w_fc = jnp.pad(params["w_fc"].T, ((0, dH), (0, dO)))                # (H_pad, O_pad)
    b_fc = jnp.pad(params["b_fc"], ((0, 0), (0, dO)))                   # (1, O_pad)
    return w_pre, b_pre, w_ih[0], b_sum[0:1], w_hh0, w_cat, b_rest, w_fc, b_fc


# ---------------------------------------------------------------------------
# Phase 1: batched input-side projection for ALL timesteps at once
#   g0 = relu(x @ W_pre + b_pre) @ W_ih0 + (b_ih0 + b_hh0)
# ---------------------------------------------------------------------------

def _input_proj_kernel(x_ref, wpre_ref, bpre_ref, wih0_ref, b0_ref, g_ref):
    tb, bb, d = x_ref.shape
    # bb is a multiple of 8, so merging (tb, bb) is a tile-aligned free view.
    x2 = x_ref[...].reshape(tb * bb, d)
    pre = jnp.maximum(
        jnp.dot(x2, wpre_ref[...], preferred_element_type=jnp.float32)
        + bpre_ref[...], 0.0)
    g = jnp.dot(pre, wih0_ref[...],
                preferred_element_type=jnp.float32) + b0_ref[...]
    g_ref[...] = g.reshape(tb, bb, -1).astype(g_ref.dtype)


# ---------------------------------------------------------------------------
# Phase 2: sequential LSTM recurrence
#   layer 0 : gates = g0[t] + h @ W_hh0
#   layer l : gates = concat([x, h], -1) @ W_cat[l] + b[l]
# ---------------------------------------------------------------------------

def _lstm_recurrence_kernel(n_layers, tt, H, T, mask_tail,
                            g0_ref, h0_ref, c0_ref,
                            whh0_ref, wcat_ref, br_ref,
                            wfc_ref, bfc_ref,
                            out_ref, hn_ref, cn_ref,
                            h_scr, c_scr):
    tb = pl.program_id(0)

    @pl.when(tb == 0)
    def _():
        h_scr[...] = h0_ref[...]
        c_scr[...] = c0_ref[...]

    B = h_scr.shape[1]

    # Recurrent state lives in local values for the whole unrolled block
    # (one scratch read here, one write at the end of the grid step).
    h = [h_scr[l] for l in range(n_layers)]
    c = [c_scr[l] for l in range(n_layers)]

    # Hoisted invariants (loaded / broadcast once per grid step).
    whh0 = whh0_ref[0]
    wcat = [wcat_ref[l] for l in range(n_layers - 1)]
    bias = [jnp.broadcast_to(br_ref[l], (B, 4 * H))
            for l in range(n_layers - 1)]

    for i in range(tt):
        if mask_tail:
            valid = (tb * tt + i) < T
        layer_in = None
        for l in range(n_layers):
            if l == 0:
                # Input-side contribution (incl. biases) was precomputed.
                gates = g0_ref[i] + jnp.dot(
                    h[0], whh0, preferred_element_type=jnp.float32)
            else:
                xh = jnp.concatenate([layer_in, h[l]], axis=-1)
                gates = jnp.dot(xh, wcat[l - 1],
                                preferred_element_type=jnp.float32) + bias[l - 1]
            # PyTorch gate order (i, f, g, o); H is a multiple of 128 so the
            # slices are lane-tile-aligned static views.
            i_g = jax.nn.sigmoid(gates[:, 0 * H:1 * H])
            f_g = jax.nn.sigmoid(gates[:, 1 * H:2 * H])
            g_g = jnp.tanh(gates[:, 2 * H:3 * H])
            o_g = jax.nn.sigmoid(gates[:, 3 * H:4 * H])
            c_new = f_g * c[l] + i_g * g_g
            h_new = o_g * jnp.tanh(c_new)
            if mask_tail:
                # Padded timesteps must not advance the state.
                c_new = jnp.where(valid, c_new, c[l])
                h_new = jnp.where(valid, h_new, h[l])
            c[l] = c_new
            h[l] = h_new
            layer_in = h_new

    for l in range(n_layers):
        h_scr[l] = h[l]
        c_scr[l] = c[l]

    # Final grid step: fc on the top layer's last valid output; emit state.
    @pl.when(tb == pl.num_programs(0) - 1)
    def _():
        out_ref[...] = (jnp.dot(h[n_layers - 1], wfc_ref[...],
                                preferred_element_type=jnp.float32)
                        + bfc_ref[...]).astype(out_ref.dtype)
        hn_ref[...] = h_scr[...]
        cn_ref[...] = c_scr[...]


# ---------------------------------------------------------------------------
# Wrapper
# ---------------------------------------------------------------------------

def compatible_lstm_predictor(x, hidden, params, *, time_block=8, target_rows=512):
    """Forward pass of CompatibleLSTMPredictor.

    x      : (B, T, D) float32, batch-first.
    hidden : tuple (h0, c0), each (n_layers, B, H) float32.
    returns: (out (B, O), (h_n, c_n)) matching the PyTorch module.
    """
    h0, c0 = hidden
    B, T, D = x.shape
    L, _, H = h0.shape
    O = params["w_fc"].shape[0]

    B_pad = _round_up(B, 8)          # sublane multiple
    H_pad = _round_up(H, 128)        # lane multiple -> aligned gate slices
    O_pad = _round_up(O, 128)        # lane-dense final store
    FourH = 4 * H_pad

    (w_pre, b_pre, w_ih0, b0, w_hh0, w_cat, b_rest,
     w_fc, b_fc) = _prepare_params(params, H_pad, O_pad)

    # Time blocking: tt timesteps per sequential grid step (phase 2);
    # tb1 = k*tt timesteps per parallel grid step (phase 1) so that the
    # phase-1 M tile = tb1*B_pad is ~target_rows (MXU friendly).
    tt = max(1, min(time_block, T))
    num_t_blocks = (T + tt - 1) // tt
    k = max(1, min(target_rows // max(tt * B_pad, 1), num_t_blocks))
    tb1 = tt * k
    T_pad = _round_up(T, tb1)
    mask_tail = (T_pad != T)

    # (B,T,D) -> time-major, pad batch/time.  Padded timesteps are masked in
    # phase 2 (zero x still yields nonzero g0 via relu(b_pre)).
    x_tm = jnp.transpose(x, (1, 0, 2))
    x_tm = jnp.pad(x_tm, ((0, T_pad - T), (0, B_pad - B), (0, 0)))

    # ---- Phase 1: parallel over (time blocks, gate-column tiles).
    tn = FourH if FourH <= 1024 else 512      # bound resident W_ih0 on v7x
    NT = FourH // tn
    g0 = pl.pallas_call(
        _input_proj_kernel,
        out_shape=jax.ShapeDtypeStruct((T_pad, B_pad, FourH), jnp.float32),
        grid_spec=pltpu.PrefetchScalarGridSpec(
            num_scalar_prefetch=0,
            grid=(T_pad // tb1, NT),
            in_specs=[
                pl.BlockSpec((tb1, B_pad, D), lambda t, n: (t, 0, 0)),   # x
                pl.BlockSpec((D, H_pad), lambda t, n: (0, 0)),           # W_pre
                pl.BlockSpec((1, H_pad), lambda t, n: (0, 0)),           # b_pre
                pl.BlockSpec((H_pad, tn), lambda t, n: (0, n)),          # W_ih0 cols
                pl.BlockSpec((1, tn), lambda t, n: (0, n)),              # b0 cols
            ],
            out_specs=pl.BlockSpec((tb1, B_pad, tn), lambda t, n: (t, 0, n)),
        ),
        compiler_params=pltpu.CompilerParams(
            dimension_semantics=("parallel", "parallel"),
            vmem_limit_bytes=_VMEM_LIMIT_BYTES),
    )(x_tm, w_pre, b_pre, w_ih0, b0)

    # ---- Phase 2: sequential recurrence, tt timesteps per grid step.
    h0_p = jnp.pad(h0, ((0, 0), (0, B_pad - B), (0, H_pad - H)))
    c0_p = jnp.pad(c0, ((0, 0), (0, B_pad - B), (0, H_pad - H)))
    Lr = max(L - 1, 1)

    kernel = functools.partial(_lstm_recurrence_kernel, L, tt, H_pad, T, mask_tail)

    out_p, hn_p, cn_p = pl.pallas_call(
        kernel,
        out_shape=(
            jax.ShapeDtypeStruct((B_pad, O_pad), jnp.float32),
            jax.ShapeDtypeStruct((L, B_pad, H_pad), jnp.float32),
            jax.ShapeDtypeStruct((L, B_pad, H_pad), jnp.float32),
        ),
        grid_spec=pltpu.PrefetchScalarGridSpec(
            num_scalar_prefetch=0,
            grid=(T_pad // tt,),
            in_specs=[
                pl.BlockSpec((tt, B_pad, FourH), lambda t: (t, 0, 0)),       # g0 block
                pl.BlockSpec((L, B_pad, H_pad), lambda t: (0, 0, 0)),        # h0
                pl.BlockSpec((L, B_pad, H_pad), lambda t: (0, 0, 0)),        # c0
                pl.BlockSpec((1, H_pad, FourH), lambda t: (0, 0, 0)),        # W_hh[0]
                pl.BlockSpec((Lr, 2 * H_pad, FourH), lambda t: (0, 0, 0)),   # W_cat[1:]
                pl.BlockSpec((Lr, 1, FourH), lambda t: (0, 0, 0)),           # b_sum[1:]
                pl.BlockSpec((H_pad, O_pad), lambda t: (0, 0)),              # W_fc
                pl.BlockSpec((1, O_pad), lambda t: (0, 0)),                  # b_fc
            ],
            out_specs=(
                pl.BlockSpec((B_pad, O_pad), lambda t: (0, 0)),              # out
                pl.BlockSpec((L, B_pad, H_pad), lambda t: (0, 0, 0)),        # h_n
                pl.BlockSpec((L, B_pad, H_pad), lambda t: (0, 0, 0)),        # c_n
            ),
            scratch_shapes=[
                pltpu.VMEM((L, B_pad, H_pad), jnp.float32),                  # h state
                pltpu.VMEM((L, B_pad, H_pad), jnp.float32),                  # c state
            ],
        ),
        compiler_params=pltpu.CompilerParams(
            dimension_semantics=("arbitrary",),
            vmem_limit_bytes=_VMEM_LIMIT_BYTES),
    )(g0, h0_p, c0_p, w_hh0, w_cat, b_rest, w_fc, b_fc)

    out = out_p[:B, :O]
    h_n = hn_p[:, :B, :H]
    c_n = cn_p[:, :B, :H]
    return out, (h_n, c_n)


# ---------------------------------------------------------------------------
# Pure-JAX reference (identical semantics, for correctness check)
# ---------------------------------------------------------------------------

def _reference_forward(x, hidden, params):
    h0, c0 = hidden
    B, T, D = x.shape
    L, _, H = h0.shape
    pre = jnp.maximum(
        jnp.einsum("btd,hd->bth", x, params["w_pre"]) + params["b_pre"][0], 0.0)
    h = [h0[l] for l in range(L)]
    c = [c0[l] for l in range(L)]
    last = None
    for t in range(T):
        inp = pre[:, t, :]
        for l in range(L):
            gates = (inp @ params["w_ih"][l].T + h[l] @ params["w_hh"][l].T
                     + params["b_ih"][l] + params["b_hh"][l])
            i_g = jax.nn.sigmoid(gates[:, 0 * H:1 * H])
            f_g = jax.nn.sigmoid(gates[:, 1 * H:2 * H])
            g_g = jnp.tanh(gates[:, 2 * H:3 * H])
            o_g = jax.nn.sigmoid(gates[:, 3 * H:4 * H])
            c[l] = f_g * c[l] + i_g * g_g
            h[l] = o_g * jnp.tanh(c[l])
            inp = h[l]
        last = inp
    out = last @ params["w_fc"].T + params["b_fc"][0]
    return out, (jnp.stack(h), jnp.stack(c))


def init_params(key, input_dim, hidden_dim, output_dim, n_layers):
    D, H, O, L = input_dim, hidden_dim, output_dim, n_layers
    ks = jax.random.split(key, 8)
    s_pre = 1.0 / jnp.sqrt(D)
    s_lstm = 1.0 / jnp.sqrt(H)
    s_fc = 1.0 / jnp.sqrt(H)
    return {
        "w_pre": jax.random.uniform(ks[0], (H, D), jnp.float32, -s_pre, s_pre),
        "b_pre": jax.random.uniform(ks[1], (1, H), jnp.float32, -s_pre, s_pre),
        "w_ih": jax.random.uniform(ks[2], (L, 4 * H, H), jnp.float32, -s_lstm, s_lstm),
        "w_hh": jax.random.uniform(ks[3], (L, 4 * H, H), jnp.float32, -s_lstm, s_lstm),
        "b_ih": jax.random.uniform(ks[4], (L, 4 * H), jnp.float32, -s_lstm, s_lstm),
        "b_hh": jax.random.uniform(ks[5], (L, 4 * H), jnp.float32, -s_lstm, s_lstm),
        "w_fc": jax.random.uniform(ks[6], (O, H), jnp.float32, -s_fc, s_fc),
        "b_fc": jax.random.uniform(ks[7], (1, O), jnp.float32, -s_fc, s_fc),
    }


if __name__ == "__main__":
    B, T = 2, 8
    input_dim, hidden_dim, output_dim, n_layers = 4, 32, 2, 2

    key = jax.random.PRNGKey(0)
    k_p, k_x = jax.random.split(key)
    params = init_params(k_p, input_dim, hidden_dim, output_dim, n_layers)
    x = jax.random.normal(k_x, (B, T, input_dim), jnp.float32)
    # init_hidden(batch_size=B): zeros of shape (n_layers, B, hidden_dim)
    h0 = jnp.zeros((n_layers, B, hidden_dim), jnp.float32)
    c0 = jnp.zeros((n_layers, B, hidden_dim), jnp.float32)

    out, (h_n, c_n) = compatible_lstm_predictor(x, (h0, c0), params)
    jax.block_until_ready((out, h_n, c_n))

    ref_out, (ref_h, ref_c) = _reference_forward(x, (h0, c0), params)
    assert jnp.allclose(out, ref_out, rtol=1e-4, atol=1e-4)
    assert jnp.allclose(h_n, ref_h, rtol=1e-4, atol=1e-4)
    assert jnp.allclose(c_n, ref_c, rtol=1e-4, atol=1e-4)

    print("KERNEL_OK")
</pallas_src>

<mosaic_0001>
module attributes {stable_mosaic.version = 11 : i64} {
  func.func @_input_proj_kernel(%arg0: i32, %arg1: i32, %arg2: memref<8x8x4xf32, #tpu.memory_space<vmem>>, %arg3: memref<4x128xf32, #tpu.memory_space<vmem>>, %arg4: memref<1x128xf32, #tpu.memory_space<vmem>>, %arg5: memref<128x512xf32, #tpu.memory_space<vmem>>, %arg6: memref<1x512xf32, #tpu.memory_space<vmem>>, %arg7: memref<8x8x512xf32, #tpu.memory_space<vmem>>) attributes {dimension_semantics = [#tpu.dimension_semantics<parallel>, #tpu.dimension_semantics<parallel>], iteration_bounds = array<i64: 1, 1>, scalar_prefetch = 0 : i64, scratch_operands = 0 : i64, tpu.core_type = #tpu.core_type<tc>, window_params = [{transform_indices = @transform_0, window_bounds = array<i64: 8, 8, 4>}, {pipeline_mode = #tpu.pipeline_mode<synchronous>, transform_indices = @transform_1, window_bounds = array<i64: 4, 128>}, {pipeline_mode = #tpu.pipeline_mode<synchronous>, transform_indices = @transform_2, window_bounds = array<i64: 1, 128>}, {transform_indices = @transform_3, window_bounds = array<i64: 128, 512>}, {transform_indices = @transform_4, window_bounds = array<i64: 1, 512>}, {transform_indices = @transform_5, window_bounds = array<i64: 8, 8, 512>}]} {
    %c0 = arith.constant 0 : index
    %c0_0 = arith.constant 0 : index
    %c0_1 = arith.constant 0 : index
    %0 = vector.load %arg2[%c0, %c0_0, %c0_1] : memref<8x8x4xf32, #tpu.memory_space<vmem>>, vector<8x8x4xf32>
    %1 = vector.shape_cast %0 : vector<8x8x4xf32> to vector<64x4xf32>
    %c0_2 = arith.constant 0 : index
    %c0_3 = arith.constant 0 : index
    %2 = vector.load %arg3[%c0_2, %c0_3] : memref<4x128xf32, #tpu.memory_space<vmem>>, vector<4x128xf32>
    %cst = arith.constant dense<0.000000e+00> : vector<64x128xf32>
    %3 = tpu.matmul %1, %2, %cst {dimension_numbers = #tpu.dot_dimension_numbers<[1], [0], [0], [1], [0, 0, 1, 1], [], []>} : vector<64x4xf32>, vector<4x128xf32>, vector<64x128xf32> -> vector<64x128xf32>
    %c0_4 = arith.constant 0 : index
    %c0_5 = arith.constant 0 : index
    %4 = vector.load %arg4[%c0_4, %c0_5] : memref<1x128xf32, #tpu.memory_space<vmem>>, vector<1x128xf32>
    %5 = vector.broadcast %4 : vector<1x128xf32> to vector<64x128xf32>
    %6 = arith.addf %3, %5 : vector<64x128xf32>
    %cst_6 = arith.constant 0.000000e+00 : f32
    %7 = vector.broadcast %cst_6 : f32 to vector<64x128xf32>
    %8 = arith.maximumf %6, %7 : vector<64x128xf32>
    %c0_7 = arith.constant 0 : index
    %c0_8 = arith.constant 0 : index
    %9 = vector.load %arg5[%c0_7, %c0_8] : memref<128x512xf32, #tpu.memory_space<vmem>>, vector<128x512xf32>
    %cst_9 = arith.constant dense<0.000000e+00> : vector<64x512xf32>
    %10 = tpu.matmul %8, %9, %cst_9 {dimension_numbers = #tpu.dot_dimension_numbers<[1], [0], [0], [1], [0, 0, 1, 1], [], []>} : vector<64x128xf32>, vector<128x512xf32>, vector<64x512xf32> -> vector<64x512xf32>
    %c0_10 = arith.constant 0 : index
    %c0_11 = arith.constant 0 : index
    %11 = vector.load %arg6[%c0_10, %c0_11] : memref<1x512xf32, #tpu.memory_space<vmem>>, vector<1x512xf32>
    %12 = vector.broadcast %11 : vector<1x512xf32> to vector<64x512xf32>
    %13 = arith.addf %10, %12 : vector<64x512xf32>
    %14 = vector.shape_cast %13 : vector<64x512xf32> to vector<8x8x512xf32>
    %c0_12 = arith.constant 0 : index
    %c0_13 = arith.constant 0 : index
    %c0_14 = arith.constant 0 : index
    %15 = vector.load %arg7[%c0_12, %c0_13, %c0_14] : memref<8x8x512xf32, #tpu.memory_space<vmem>>, vector<8x8x512xf32>
    tpu.vector_store %arg7[%c0_12, %c0_13, %c0_14], %14 {strides = array<i32>} : memref<8x8x512xf32, #tpu.memory_space<vmem>>, vector<8x8x512xf32>,
    return
  }
  func.func @transform_0(%arg0: i32, %arg1: i32) -> (i32, i32, i32) {
    %c0_i32 = arith.constant 0 : i32
    %c0_i32_0 = arith.constant 0 : i32
    %c0_i32_1 = arith.constant 0 : i32
    return %arg0, %c0_i32, %c0_i32_0 : i32, i32, i32
  }
  func.func @transform_1(%arg0: i32, %arg1: i32) -> (i32, i32) {
    %c0_i32 = arith.constant 0 : i32
    %c0_i32_0 = arith.constant 0 : i32
    %c0_i32_1 = arith.constant 0 : i32
    return %c0_i32, %c0_i32_0 : i32, i32
  }
  func.func @transform_2(%arg0: i32, %arg1: i32) -> (i32, i32) {
    %c0_i32 = arith.constant 0 : i32
    %c0_i32_0 = arith.constant 0 : i32
    %c0_i32_1 = arith.constant 0 : i32
    return %c0_i32, %c0_i32_0 : i32, i32
  }
  func.func @transform_3(%arg0: i32, %arg1: i32) -> (i32, i32) {
    %c0_i32 = arith.constant 0 : i32
    %c0_i32_0 = arith.constant 0 : i32
    return %c0_i32, %arg1 : i32, i32
  }
  func.func @transform_4(%arg0: i32, %arg1: i32) -> (i32, i32) {
    %c0_i32 = arith.constant 0 : i32
    %c0_i32_0 = arith.constant 0 : i32
    return %c0_i32, %arg1 : i32, i32
  }
  func.func @transform_5(%arg0: i32, %arg1: i32) -> (i32, i32, i32) {
    %c0_i32 = arith.constant 0 : i32
    %c0_i32_0 = arith.constant 0 : i32
    return %arg0, %c0_i32, %arg1 : i32, i32, i32
  }
}

</mosaic_0001>

<llo_original>
// kernel: tpu_custom_call.1
$region0: #{tpu_custom_call.1}
  #allocation0 [shape = 'u32[]', space=smem, size = 0x4, offset = 0x4, fixed_abs, tag = 'smem constant byte address 0x4 - core index']
  #allocation1 [shape = 'u32[72,128]{1,0:T(1,128)}', space=vmem, size = 0x9000, scoped, tag = 'internal scratch']
  %s0 = inlined_call_operand.vmem [shape: f32[8,8,4], index: 0, kind: input, shape index: {}]
  %s1 = inlined_call_operand.vmem [shape: f32[4,128], index: 1, kind: input, shape index: {}]
  %s2 = inlined_call_operand.vmem [shape: f32[1,128], index: 2, kind: input, shape index: {}]
  %s3 = inlined_call_operand.hbm [shape: f32[128,512], index: 3, kind: input, shape index: {}]
  %s4 = inlined_call_operand.vmem [shape: f32[1,512], index: 4, kind: input, shape index: {}]
  %s5 = inlined_call_operand.hbm [shape: f32[8,8,512], index: 5, kind: output, shape index: {}]
  %s6 = sld [smem:[#allocation0]]
  $region34: #{tpu_custom_call.1} parent=0
    _
  %s8 = ssub.s32 1, %s6
  %s9 = scalar_select 0, %s8, %s6
  $region1: #{tpu_custom_call.1} parent=0
    #allocation2 [shape = 'u8[262144]{0}', space=vmem, size = 0x40000, scoped, tag = 'input window, operand 3, single buffered']
    #allocation3 [shape = 's32[1]{0}', space=sflag, size = 0x4, scoped, tag = 'scoped memory for tpu_custom_call.1']
    #allocation4 [shape = 's32[1]{0}', space=sflag, size = 0x4, scoped, tag = 'scoped memory for tpu_custom_call.1']
    #allocation5 [shape = 'u8[131072]{0}', space=vmem, size = 0x20000, scoped, tag = 'output window, operand 0, single buffered']
    %10 = vsyncpa [#allocation3], 0
    %11 = vsyncpa [#allocation4], 0
    // Predicated region
    $region2: #{tpu_custom_call.1} parent=1 // pred_check
      _
    $region3: #{tpu_custom_call.1} parent=1 // pred_check_branch
      %13 = sbr.rel (0) target = $region5
    $region4: #{tpu_custom_call.1} parent=1 // pred_region
      _
    $region5: #{tpu_custom_call.1} parent=1 // pred_fallthru
      _
    // Predicated region
    $region6: #{tpu_custom_call.1} parent=1 // pred_check
      _
    $region7: #{tpu_custom_call.1} parent=1 // pred_check_branch
      %15 = sbr.rel (0) target = $region9
    $region8: #{tpu_custom_call.1} parent=1 // pred_region
      _
    $region9: #{tpu_custom_call.1} parent=1 // pred_fallthru
      _
    // Predicated region
    $region10: #{tpu_custom_call.1} parent=1 // pred_check
      _
    $region11: #{tpu_custom_call.1} parent=1 // pred_check_branch
      %17 = sbr.rel (0) target = $region13
    $region12: #{tpu_custom_call.1} parent=1 // pred_region
      _
    $region13: #{tpu_custom_call.1} parent=1 // pred_fallthru
      _
    // Predicated region
    $region14: #{tpu_custom_call.1} parent=1 // pred_check
      _
    $region15: #{tpu_custom_call.1} parent=1 // pred_check_branch
      %19 = sbr.rel (0) target = $region17
    $region16: #{tpu_custom_call.1} parent=1 // pred_region
      %21 = vsyncadd [#allocation3], 0
      %s22 = sshll.u32 %s3, 4
      %s23 = int_to_ptr.hbm [resolvable:$true] %s22
      %s24 = sshll.u32 [#allocation2], 4
      %s25 = int_to_ptr.vmem [resolvable:$true] %s24
      %30 = dma.hbm_to_vmem [thread:$0]  %s23, 8192, %s25, [#allocation3], 512, 512, 32
    $region17: #{tpu_custom_call.1} parent=1 // pred_fallthru
      _
    // Predicated region
    $region18: #{tpu_custom_call.1} parent=1 // pred_check
      _
    $region19: #{tpu_custom_call.1} parent=1 // pred_check_branch
      %32 = sbr.rel (0) target = $region21
    $region20: #{tpu_custom_call.1} parent=1 // pred_region
      _
    $region21: #{tpu_custom_call.1} parent=1 // pred_fallthru
      _
    // Predicated region
    $region22: #{tpu_custom_call.1} parent=1 // pred_check
      _
    $region23: #{tpu_custom_call.1} parent=1 // pred_check_branch
      %34 = sbr.rel (0) target = $region25
    $region24: #{tpu_custom_call.1} parent=1 // pred_region
      %36 = dma.done [#allocation3], 8192
    $region25: #{tpu_custom_call.1} parent=1 // pred_fallthru
      _
    %v37 = vld [vmem:[%s0] sm:$0xff]
    %v38 = vld [vmem:[%s0 + $0x8] sm:$0xff]
    %v39 = vld [vmem:[%s0 + $0x10] sm:$0xff]
    %v40 = vld [vmem:[%s0 + $0x18] sm:$0xff]
    %v41 = vld [vmem:[%s0 + $0x20] sm:$0xff]
    %v42 = vld [vmem:[%s0 + $0x28] sm:$0xff]
    %v43 = vld [vmem:[%s0 + $0x30] sm:$0xff]
    %v44 = vld [vmem:[%s0 + $0x38] sm:$0xff]
    %v45 = vld [vmem:[%s1] sm:$0xf]
    %v46 = vld [vmem:[%s2] sm:$0x1]
    %v48 = vperm.slane %v46, 0
    %vm50 = vcmask 31744
    %v52 = vsel %vm50, %v37, 0
    %v55 = vsel %vm50, %v38, 0
    %v58 = vsel %vm50, %v39, 0
    %v61 = vsel %vm50, %v40, 0
    %v64 = vsel %vm50, %v41, 0
    %v67 = vsel %vm50, %v42, 0
    %v70 = vsel %vm50, %v43, 0
    %v73 = vsel %vm50, %v44, 0
    %vm75 = vcmask 1043456
    %v77 = vsel %vm75, %v45, 0
    %79 = vmatpush.msra.mxu0 0.0
    %80 = vmatpush.msra.mxu0 0.0
    %81 = vmatpush.msra.mxu0 0.0
    %82 = vmatpush.msra.mxu0 0.0
    %83 = vmatpush.msra.mxu0 0.0
    %84 = vmatpush.msra.mxu0 0.0
    %85 = vmatpush.msra.mxu0 0.0
    %86 = vmatpush.msra.mxu0 0.0
    %87 = vmatpush.msra.mxu0 0.0
    %88 = vmatpush.msra.mxu0 0.0
    %89 = vmatpush.msra.mxu0 0.0
    %90 = vmatpush.msra.mxu0 0.0
    %91 = vmatpush.msra.mxu0 0.0
    %92 = vmatpush.msra.mxu0 0.0
    %93 = vmatpush.msra.mxu0 0.0
    %94 = vmatpush.msra.mxu0 %v77
    %95 = vmatmul.f32.gmra.mxu0 %v52
    %v96 = vpop.f32.mrf.mxu0
    %v97 = vadd.f32 %v48, %v96
    %98 = vmatmul.f32.gmra.mxu0 %v55
    %v99 = vpop.f32.mrf.mxu0
    %v100 = vadd.f32 %v48, %v99
    %101 = vmatmul.f32.gmra.mxu0 %v58
    %v102 = vpop.f32.mrf.mxu0
    %v103 = vadd.f32 %v48, %v102
    %104 = vmatmul.f32.gmra.mxu0 %v61
    %v105 = vpop.f32.mrf.mxu0
    %v106 = vadd.f32 %v48, %v105
    %107 = vmatmul.f32.gmra.mxu0 %v64
    %v108 = vpop.f32.mrf.mxu0
    %v109 = vadd.f32 %v48, %v108
    %110 = vmatmul.f32.gmra.mxu0 %v67
    %v111 = vpop.f32.mrf.mxu0
    %v112 = vadd.f32 %v48, %v111
    %113 = vmatmul.f32.gmra.mxu0 %v70
    %v114 = vpop.f32.mrf.mxu0
    %v115 = vadd.f32 %v48, %v114
    %116 = vmatmul.f32.gmra.mxu0 %v73
    %v117 = vpop.f32.mrf.mxu0
    %v118 = vadd.f32 %v48, %v117
    %119 = vdwg.mxu0
    %v120 = vmax.f32 %v97, 0.0
    %v121 = vmax.f32 %v100, 0.0
    %v122 = vmax.f32 %v103, 0.0
    %v123 = vmax.f32 %v106, 0.0
    %v124 = vmax.f32 %v109, 0.0
    %v125 = vmax.f32 %v112, 0.0
    %v126 = vmax.f32 %v115, 0.0
    %v127 = vmax.f32 %v118, 0.0
    %v128 = vld [vmem:[#allocation2] sm:$0xff]
    %v129 = vld [vmem:[#allocation2 + $0x8] sm:$0xff]
    %v130 = vld [vmem:[#allocation2 + $0x10] sm:$0xff]
    %v131 = vld [vmem:[#allocation2 + $0x18] sm:$0xff]
    %v132 = vld [vmem:[#allocation2 + $0x20] sm:$0xff]
    %v133 = vld [vmem:[#allocation2 + $0x28] sm:$0xff]
    %v134 = vld [vmem:[#allocation2 + $0x30] sm:$0xff]
    %v135 = vld [vmem:[#allocation2 + $0x38] sm:$0xff]
    %v136 = vld [vmem:[#allocation2 + $0x40] sm:$0xff]
    %v137 = vld [vmem:[#allocation2 + $0x48] sm:$0xff]
    %v138 = vld [vmem:[#allocation2 + $0x50] sm:$0xff]
    %v139 = vld [vmem:[#allocation2 + $0x58] sm:$0xff]
    %v140 = vld [vmem:[#allocation2 + $0x60] sm:$0xff]
    %v141 = vld [vmem:[#allocation2 + $0x68] sm:$0xff]
    %v142 = vld [vmem:[#allocation2 + $0x70] sm:$0xff]
    %v143 = vld [vmem:[#allocation2 + $0x78] sm:$0xff]
    %v144 = vld [vmem:[#allocation2 + $0x80] sm:$0xff]
    %v145 = vld [vmem:[#allocation2 + $0x88] sm:$0xff]
    %v146 = vld [vmem:[#allocation2 + $0x90] sm:$0xff]
    %v147 = vld [vmem:[#allocation2 + $0x98] sm:$0xff]
    %v148 = vld [vmem:[#allocation2 + $0xa0] sm:$0xff]
    %v149 = vld [vmem:[#allocation2 + $0xa8] sm:$0xff]
    %v150 = vld [vmem:[#allocation2 + $0xb0] sm:$0xff]
    %v151 = vld [vmem:[#allocation2 + $0xb8] sm:$0xff]
    %v152 = vld [vmem:[#allocation2 + $0xc0] sm:$0xff]
    %v153 = vld [vmem:[#allocation2 + $0xc8] sm:$0xff]
    %v154 = vld [vmem:[#allocation2 + $0xd0] sm:$0xff]
    %v155 = vld [vmem:[#allocation2 + $0xd8] sm:$0xff]
    %v156 = vld [vmem:[#allocation2 + $0xe0] sm:$0xff]
    %v157 = vld [vmem:[#allocation2 + $0xe8] sm:$0xff]
    %v158 = vld [vmem:[#allocation2 + $0xf0] sm:$0xff]
    %v159 = vld [vmem:[#allocation2 + $0xf8] sm:$0xff]
    %v160 = vld [vmem:[#allocation2 + $0x100] sm:$0xff]
    %v161 = vld [vmem:[#allocation2 + $0x108] sm:$0xff]
    %v162 = vld [vmem:[#allocation2 + $0x110] sm:$0xff]
    %v163 = vld [vmem:[#allocation2 + $0x118] sm:$0xff]
    %v164 = vld [vmem:[#allocation2 + $0x120] sm:$0xff]
    %v165 = vld [vmem:[#allocation2 + $0x128] sm:$0xff]
    %v166 = vld [vmem:[#allocation2 + $0x130] sm:$0xff]
    %v167 = vld [vmem:[#allocation2 + $0x138] sm:$0xff]
    %v168 = vld [vmem:[#allocation2 + $0x140] sm:$0xff]
    %v169 = vld [vmem:[#allocation2 + $0x148] sm:$0xff]
    %v170 = vld [vmem:[#allocation2 + $0x150] sm:$0xff]
    %v171 = vld [vmem:[#allocation2 + $0x158] sm:$0xff]
    %v172 = vld [vmem:[#allocation2 + $0x160] sm:$0xff]
    %v173 = vld [vmem:[#allocation2 + $0x168] sm:$0xff]
    %v174 = vld [vmem:[#allocation2 + $0x170] sm:$0xff]
    %v175 = vld [vmem:[#allocation2 + $0x178] sm:$0xff]
    %v176 = vld [vmem:[#allocation2 + $0x180] sm:$0xff]
    %v177 = vld [vmem:[#allocation2 + $0x188] sm:$0xff]
    %v178 = vld [vmem:[#allocation2 + $0x190] sm:$0xff]
    %v179 = vld [vmem:[#allocation2 + $0x198] sm:$0xff]
    %v180 = vld [vmem:[#allocation2 + $0x1a0] sm:$0xff]
    %v181 = vld [vmem:[#allocation2 + $0x1a8] sm:$0xff]
    %v182 = vld [vmem:[#allocation2 + $0x1b0] sm:$0xff]
    %v183 = vld [vmem:[#allocation2 + $0x1b8] sm:$0xff]
    %v184 = vld [vmem:[#allocation2 + $0x1c0] sm:$0xff]
    %v185 = vld [vmem:[#allocation2 + $0x1c8] sm:$0xff]
    %v186 = vld [vmem:[#allocation2 + $0x1d0] sm:$0xff]
    %v187 = vld [vmem:[#allocation2 + $0x1d8] sm:$0xff]
    %v188 = vld [vmem:[#allocation2 + $0x1e0] sm:$0xff]
    %v189 = vld [vmem:[#allocation2 + $0x1e8] sm:$0xff]
    %v190 = vld [vmem:[#allocation2 + $0x1f0] sm:$0xff]
    %v191 = vld [vmem:[#allocation2 + $0x1f8] sm:$0xff]
    %v192 = vld [vmem:[%s4] sm:$0xf]
    %v194 = vperm.slane %v192, 0
    %v195 = vperm.slane %v192, 1
    %v196 = vperm.slane %v192, 2
    %v197 = vperm.slane %v192, 3
    %202 = vmatpush.msra.mxu0 %v188
    %203 = vmatpush.msra.mxu0 %v184
    %204 = vmatpush.msra.mxu0 %v180
    %205 = vmatpush.msra.mxu0 %v176
    %206 = vmatpush.msra.mxu0 %v172
    %207 = vmatpush.msra.mxu0 %v168
    %208 = vmatpush.msra.mxu0 %v164
    %209 = vmatpush.msra.mxu0 %v160
    %210 = vmatpush.msra.mxu0 %v156
    %211 = vmatpush.msra.mxu0 %v152
    %212 = vmatpush.msra.mxu0 %v148
    %213 = vmatpush.msra.mxu0 %v144
    %214 = vmatpush.msra.mxu0 %v140
    %215 = vmatpush.msra.mxu0 %v136
    %216 = vmatpush.msra.mxu0 %v132
    %217 = vmatpush.msra.mxu0 %v128
    %218 = vmatmul.f32.gmra.mxu0 %v120
    %v219 = vpop.f32.mrf.mxu0
    %v220 = vadd.f32 %v194, %v219
    %221 = vmatmul.f32.gmra.mxu0 %v121
    %v222 = vpop.f32.mrf.mxu0
    %v223 = vadd.f32 %v194, %v222
    %224 = vmatmul.f32.gmra.mxu0 %v122
    %v225 = vpop.f32.mrf.mxu0
    %v226 = vadd.f32 %v194, %v225
    %227 = vmatmul.f32.gmra.mxu0 %v123
    %v228 = vpop.f32.mrf.mxu0
    %v229 = vadd.f32 %v194, %v228
    %230 = vmatmul.f32.gmra.mxu0 %v124
    %v231 = vpop.f32.mrf.mxu0
    %v232 = vadd.f32 %v194, %v231
    %233 = vmatmul.f32.gmra.mxu0 %v125
    %v234 = vpop.f32.mrf.mxu0
    %v235 = vadd.f32 %v194, %v234
    %236 = vmatmul.f32.gmra.mxu0 %v126
    %v237 = vpop.f32.mrf.mxu0
    %v238 = vadd.f32 %v194, %v237
    %239 = vmatmul.f32.gmra.mxu0 %v127
    %v240 = vpop.f32.mrf.mxu0
    %v241 = vadd.f32 %v194, %v240
    %242 = vdwg.mxu0
    %243 = vmatpush.msra.mxu0 %v189
    %244 = vmatpush.msra.mxu0 %v185
    %245 = vmatpush.msra.mxu0 %v181
    %246 = vmatpush.msra.mxu0 %v177
    %247 = vmatpush.msra.mxu0 %v173
    %248 = vmatpush.msra.mxu0 %v169
    %249 = vmatpush.msra.mxu0 %v165
    %250 = vmatpush.msra.mxu0 %v161
    %251 = vmatpush.msra.mxu0 %v157
    %252 = vmatpush.msra.mxu0 %v153
    %253 = vmatpush.msra.mxu0 %v149
    %254 = vmatpush.msra.mxu0 %v145
    %255 = vmatpush.msra.mxu0 %v141
    %256 = vmatpush.msra.mxu0 %v137
    %257 = vmatpush.msra.mxu0 %v133
    %258 = vmatpush.msra.mxu0 %v129
    %259 = vmatmul.f32.gmra.mxu0 %v120
    %v260 = vpop.f32.mrf.mxu0
    %v261 = vadd.f32 %v195, %v260
    %262 = vmatmul.f32.gmra.mxu0 %v121
    %v263 = vpop.f32.mrf.mxu0
    %v264 = vadd.f32 %v195, %v263
    %265 = vmatmul.f32.gmra.mxu0 %v122
    %v266 = vpop.f32.mrf.mxu0
    %v267 = vadd.f32 %v195, %v266
    %268 = vmatmul.f32.gmra.mxu0 %v123
    %v269 = vpop.f32.mrf.mxu0
    %v270 = vadd.f32 %v195, %v269
    %271 = vmatmul.f32.gmra.mxu0 %v124
    %v272 = vpop.f32.mrf.mxu0
    %v273 = vadd.f32 %v195, %v272
    %274 = vmatmul.f32.gmra.mxu0 %v125
    %v275 = vpop.f32.mrf.mxu0
    %v276 = vadd.f32 %v195, %v275
    %277 = vmatmul.f32.gmra.mxu0 %v126
    %v278 = vpop.f32.mrf.mxu0
    %v279 = vadd.f32 %v195, %v278
    %280 = vmatmul.f32.gmra.mxu0 %v127
    %v281 = vpop.f32.mrf.mxu0
    %v282 = vadd.f32 %v195, %v281
    %283 = vdwg.mxu0
    %284 = vmatpush.msra.mxu0 %v190
    %285 = vmatpush.msra.mxu0 %v186
    %286 = vmatpush.msra.mxu0 %v182
    %287 = vmatpush.msra.mxu0 %v178
    %288 = vmatpush.msra.mxu0 %v174
    %289 = vmatpush.msra.mxu0 %v170
    %290 = vmatpush.msra.mxu0 %v166
    %291 = vmatpush.msra.mxu0 %v162
    %292 = vmatpush.msra.mxu0 %v158
    %293 = vmatpush.msra.mxu0 %v154
    %294 = vmatpush.msra.mxu0 %v150
    %295 = vmatpush.msra.mxu0 %v146
    %296 = vmatpush.msra.mxu0 %v142
    %297 = vmatpush.msra.mxu0 %v138
    %298 = vmatpush.msra.mxu0 %v134
    %299 = vmatpush.msra.mxu0 %v130
    %300 = vmatmul.f32.gmra.mxu0 %v120
    %v301 = vpop.f32.mrf.mxu0
    %v302 = vadd.f32 %v196, %v301
    %303 = vmatmul.f32.gmra.mxu0 %v121
    %v304 = vpop.f32.mrf.mxu0
    %v305 = vadd.f32 %v196, %v304
    %306 = vmatmul.f32.gmra.mxu0 %v122
    %v307 = vpop.f32.mrf.mxu0
    %v308 = vadd.f32 %v196, %v307
    %309 = vmatmul.f32.gmra.mxu0 %v123
    %v310 = vpop.f32.mrf.mxu0
    %v311 = vadd.f32 %v196, %v310
    %312 = vmatmul.f32.gmra.mxu0 %v124
    %v313 = vpop.f32.mrf.mxu0
    %v314 = vadd.f32 %v196, %v313
    %315 = vmatmul.f32.gmra.mxu0 %v125
    %v316 = vpop.f32.mrf.mxu0
    %v317 = vadd.f32 %v196, %v316
    %318 = vmatmul.f32.gmra.mxu0 %v126
    %v319 = vpop.f32.mrf.mxu0
    %v320 = vadd.f32 %v196, %v319
    %321 = vmatmul.f32.gmra.mxu0 %v127
    %v322 = vpop.f32.mrf.mxu0
    %v323 = vadd.f32 %v196, %v322
    %324 = vdwg.mxu0
    %325 = vmatpush.msra.mxu0 %v191
    %326 = vmatpush.msra.mxu0 %v187
    %327 = vmatpush.msra.mxu0 %v183
    %328 = vmatpush.msra.mxu0 %v179
    %329 = vmatpush.msra.mxu0 %v175
    %330 = vmatpush.msra.mxu0 %v171
    %331 = vmatpush.msra.mxu0 %v167
    %332 = vmatpush.msra.mxu0 %v163
    %333 = vmatpush.msra.mxu0 %v159
    %334 = vmatpush.msra.mxu0 %v155
    %335 = vmatpush.msra.mxu0 %v151
    %336 = vmatpush.msra.mxu0 %v147
    %337 = vmatpush.msra.mxu0 %v143
    %338 = vmatpush.msra.mxu0 %v139
    %339 = vmatpush.msra.mxu0 %v135
    %340 = vmatpush.msra.mxu0 %v131
    %341 = vmatmul.f32.gmra.mxu0 %v120
    %v342 = vpop.f32.mrf.mxu0
    %v343 = vadd.f32 %v197, %v342
    %344 = vmatmul.f32.gmra.mxu0 %v121
    %v345 = vpop.f32.mrf.mxu0
    %v346 = vadd.f32 %v197, %v345
    %347 = vmatmul.f32.gmra.mxu0 %v122
    %v348 = vpop.f32.mrf.mxu0
    %v349 = vadd.f32 %v197, %v348
    %350 = vmatmul.f32.gmra.mxu0 %v123
    %v351 = vpop.f32.mrf.mxu0
    %v352 = vadd.f32 %v197, %v351
    %353 = vmatmul.f32.gmra.mxu0 %v124
    %v354 = vpop.f32.mrf.mxu0
    %v355 = vadd.f32 %v197, %v354
    %356 = vmatmul.f32.gmra.mxu0 %v125
    %v357 = vpop.f32.mrf.mxu0
    %v358 = vadd.f32 %v197, %v357
    %359 = vmatmul.f32.gmra.mxu0 %v126
    %v360 = vpop.f32.mrf.mxu0
    %v361 = vadd.f32 %v197, %v360
    %362 = vmatmul.f32.gmra.mxu0 %v127
    %v363 = vpop.f32.mrf.mxu0
    %v364 = vadd.f32 %v197, %v363
    %365 = vdwg.mxu0
    %366 = vst [vmem:[#allocation5] sm:$0xff] %v220
    %367 = vst [vmem:[#allocation5 + $0x8] sm:$0xff] %v261
    %368 = vst [vmem:[#allocation5 + $0x10] sm:$0xff] %v302
    %369 = vst [vmem:[#allocation5 + $0x18] sm:$0xff] %v343
    %370 = vst [vmem:[#allocation5 + $0x20] sm:$0xff] %v223
    %371 = vst [vmem:[#allocation5 + $0x28] sm:$0xff] %v264
    %372 = vst [vmem:[#allocation5 + $0x30] sm:$0xff] %v305
    %373 = vst [vmem:[#allocation5 + $0x38] sm:$0xff] %v346
    %374 = vst [vmem:[#allocation5 + $0x40] sm:$0xff] %v226
    %375 = vst [vmem:[#allocation5 + $0x48] sm:$0xff] %v267
    %376 = vst [vmem:[#allocation5 + $0x50] sm:$0xff] %v308
    %377 = vst [vmem:[#allocation5 + $0x58] sm:$0xff] %v349
    %378 = vst [vmem:[#allocation5 + $0x60] sm:$0xff] %v229
    %379 = vst [vmem:[#allocation5 + $0x68] sm:$0xff] %v270
    %380 = vst [vmem:[#allocation5 + $0x70] sm:$0xff] %v311
    %381 = vst [vmem:[#allocation5 + $0x78] sm:$0xff] %v352
    %382 = vst [vmem:[#allocation5 + $0x80] sm:$0xff] %v232
    %383 = vst [vmem:[#allocation5 + $0x88] sm:$0xff] %v273
    %384 = vst [vmem:[#allocation5 + $0x90] sm:$0xff] %v314
    %385 = vst [vmem:[#allocation5 + $0x98] sm:$0xff] %v355
    %386 = vst [vmem:[#allocation5 + $0xa0] sm:$0xff] %v235
    %387 = vst [vmem:[#allocation5 + $0xa8] sm:$0xff] %v276
    %388 = vst [vmem:[#allocation5 + $0xb0] sm:$0xff] %v317
    %389 = vst [vmem:[#allocation5 + $0xb8] sm:$0xff] %v358
    %390 = vst [vmem:[#allocation5 + $0xc0] sm:$0xff] %v238
    %391 = vst [vmem:[#allocation5 + $0xc8] sm:$0xff] %v279
    %392 = vst [vmem:[#allocation5 + $0xd0] sm:$0xff] %v320
    %393 = vst [vmem:[#allocation5 + $0xd8] sm:$0xff] %v361
    %394 = vst [vmem:[#allocation5 + $0xe0] sm:$0xff] %v241
    %395 = vst [vmem:[#allocation5 + $0xe8] sm:$0xff] %v282
    %396 = vst [vmem:[#allocation5 + $0xf0] sm:$0xff] %v323
    %397 = vst [vmem:[#allocation5 + $0xf8] sm:$0xff] %v364
    // Predicated region
    $region26: #{tpu_custom_call.1} parent=1 // pred_check
      _
    $region27: #{tpu_custom_call.1} parent=1 // pred_check_branch
      %399 = sbr.rel (0) target = $region29
    $region28: #{tpu_custom_call.1} parent=1 // pred_region
      %401 = vsyncadd [#allocation4], 0
      %s402 = sshll.u32 [#allocation5], 4
      %s403 = int_to_ptr.vmem [resolvable:$true] %s402
      %s404 = sshll.u32 %s5, 4
      %s405 = int_to_ptr.hbm [resolvable:$true] %s404
      %410 = dma.vmem_to_hbm [thread:$0]  %s403, 4096, %s405, [#allocation4], 512, 512, 32
    $region29: #{tpu_custom_call.1} parent=1 // pred_fallthru
      _
    // Predicated region
    $region30: #{tpu_custom_call.1} parent=1 // pred_check
      _
    $region31: #{tpu_custom_call.1} parent=1 // pred_check_branch
      %412 = sbr.rel (0) target = $region33
    $region32: #{tpu_custom_call.1} parent=1 // pred_region
      %414 = dma.done [#allocation4], 4096
    $region33: #{tpu_custom_call.1} parent=1 // pred_fallthru
      _
    %415 = vsyncpa [#allocation3], 1
    %416 = vsyncpa [#allocation4], 1

</llo_original>
